<compile_context>
chip_gen: v5e
topology: v5e:2x2
jax: 0.10.0
libtpu: 0.0.40
codegen_flags: <defaults>
</compile_context>

<pallas_src>
import jax
import jax.numpy as jnp
from jax import lax
from jax.experimental import pallas as pl
from jax.experimental.pallas import tpu as pltpu


def _dot_nt(a, b):
    # a @ b.T, contracting the last axis of both operands (single MXU pass,
    # no transpose materialized in VMEM).
    return lax.dot_general(
        a, b, dimension_numbers=(((1,), (1,)), ((), ())),
        preferred_element_type=jnp.float32)


def forward_kernel(catc_ref, catg_ref, t1_ref, og_ref, oc_ref, t2_ref, t3_ref,
                   out_ref):
    # catc_ref: (N, Kc)      grid-invariant (fetched once)
    # catg_ref: (M, Kg)      grid-invariant
    # t1_ref:   (N, M)       grid-invariant  = C1 @ G1^T
    # og_ref:   (Lt, M, Kc)  per-step slab of OG (native layout)
    # oc_ref:   (Lt, N, Kg)  per-step slab of OC (native layout)
    # t2_ref:   (Lt, N, 1)   = (O1 @ C2^T)[l]
    # t3_ref:   (Lt, 1, M)   = (O2 @ G2^T)[l]
    # out_ref:  (Lt, N, M)
    catc = catc_ref[...]
    catg = catg_ref[...]
    base = t1_ref[...]
    lt = out_ref.shape[0]
    for l in range(lt):  # static unroll; Lt is a small compile-time constant
        acc = _dot_nt(catc, og_ref[l]) + _dot_nt(oc_ref[l], catg)
        out_ref[l] = acc + base + t2_ref[l] + t3_ref[l]


def _round_up(x, m):
    return -(-x // m) * m


def _vmem_capacity_bytes():
    try:
        return int(pltpu.get_tpu_info().vmem_capacity_bytes)
    except Exception:
        return 64 << 20  # conservative fallback (v7x per-TensorCore VMEM)


def _working_set_bytes(lt, N, M, Kc, Kg):
    """VMEM footprint using PADDED block shapes: last dim -> multiple of 128
    lanes, second-to-last -> multiple of 8 sublanes (f32), 2 pipeline buffers
    per array (conservatively counted for the grid-invariant ones too)."""
    f32 = 4
    Np = _round_up(N, 8)
    Ml = _round_up(M, 128)   # M as a lane (last) dim
    Ms = _round_up(M, 8)     # M as a sublane dim
    Kcp = _round_up(Kc, 128)
    Kgp = _round_up(Kg, 128)
    fixed = 2 * f32 * (Np * Kcp          # catC
                       + Ms * Kgp        # catG
                       + Np * Ml)        # T1
    per_l = 2 * f32 * (Ms * Kcp          # OG slice
                       + Np * Kgp        # OC slice
                       + Np * 128        # T2 slice (last dim 1 pads to 128)
                       + 8 * Ml          # T3 slice
                       + Np * Ml)        # output slice
    return fixed + lt * per_l


def _pick_lt(L, N, M, Kc, Kg, budget_bytes, max_lt=16):
    """Largest Lt (capped) whose padded, double-buffered working set fits the
    budget.  Cap at ceil(L/2) so the grid has >= 2 steps (v7x megacore).
    Divisors of L are preferred; otherwise the final grid step is a clipped
    partial block (Pallas discards out-of-bounds writes)."""
    cap = max(1, min(L, max_lt, -(-L // 2) if L > 1 else 1))
    fits = [lt for lt in range(1, cap + 1)
            if _working_set_bytes(lt, N, M, Kc, Kg) <= budget_bytes]
    if not fits:
        return 1
    best = max(fits)
    divisors = [lt for lt in fits if L % lt == 0]
    if divisors and 2 * max(divisors) >= best:
        return max(divisors)
    return best


def matrix_model_forward(params, L, N, M):
    C1, C2, G1, G2, O1, O2, OC, OG = (
        params["C1"], params["C2"], params["G1"], params["G2"],
        params["O1"], params["O2"], params["OC"], params["OG"])
    K1, K2, K3 = C1.shape[1], C2.shape[1], G2.shape[1]
    Kc = K1 + K2   # columns of OG / catC
    Kg = K1 + K3   # columns of OC / catG

    # ---- tiny wrapper-side prep (no large HBM materialization) ----
    catC = jnp.concatenate([C1, C2], axis=1)                       # (N, Kc)
    catG = jnp.concatenate([G1, G2], axis=1)                       # (M, Kg)
    OG3 = OG.reshape(L, M, Kc)                                     # free reshape
    OC3 = OC.reshape(L, N, Kg)                                     # free reshape
    T1 = (C1 @ G1.T).astype(jnp.float32)                           # (N, M)
    T2 = (O1 @ C2.T).reshape(L, N, 1).astype(jnp.float32)          # (L, N, 1)
    T3 = (O2 @ G2.T).reshape(L, 1, M).astype(jnp.float32)          # (L, 1, M)

    vmem_cap = _vmem_capacity_bytes()
    budget = int(0.45 * vmem_cap)
    Lt = _pick_lt(L, N, M, Kc, Kg, budget)
    grid = (pl.cdiv(L, Lt),)
    vmem_limit = int(min(0.75 * vmem_cap,
                         max(32 << 20,
                             1.25 * _working_set_bytes(Lt, N, M, Kc, Kg))))

    cost = pl.CostEstimate(
        flops=2 * L * N * M * (Kc + Kg),
        transcendentals=0,
        bytes_accessed=4 * (L * (M * Kc + N * Kg + N * M + N + M)
                            + N * Kc + M * Kg + N * M))

    return pl.pallas_call(
        forward_kernel,
        out_shape=jax.ShapeDtypeStruct((L, N, M), jnp.float32),
        grid_spec=pltpu.PrefetchScalarGridSpec(
            num_scalar_prefetch=0,
            grid=grid,
            in_specs=[
                pl.BlockSpec((N, Kc), lambda i: (0, 0)),          # catC (invariant)
                pl.BlockSpec((M, Kg), lambda i: (0, 0)),          # catG (invariant)
                pl.BlockSpec((N, M), lambda i: (0, 0)),           # T1   (invariant)
                pl.BlockSpec((Lt, M, Kc), lambda i: (i, 0, 0)),   # OG slab
                pl.BlockSpec((Lt, N, Kg), lambda i: (i, 0, 0)),   # OC slab
                pl.BlockSpec((Lt, N, 1), lambda i: (i, 0, 0)),    # T2 slab
                pl.BlockSpec((Lt, 1, M), lambda i: (i, 0, 0)),    # T3 slab
            ],
            out_specs=pl.BlockSpec((Lt, N, M), lambda i: (i, 0, 0)),
        ),
        compiler_params=pltpu.CompilerParams(
            dimension_semantics=("parallel",),   # no reduction over L -> megacore OK
            vmem_limit_bytes=vmem_limit),
        cost_estimate=cost,
    )(catC, catG, T1, OG3, OC3, T2, T3)


def make_params(key, K1, K2, K3, L, N, M):
    ks = jax.random.split(key, 10)
    nrm = lambda k, shape: (0.1 * jax.random.normal(k, shape)).astype(jnp.float32)
    return {
        "C1": nrm(ks[0], (N, K1)),
        "C2": nrm(ks[1], (N, K2)),
        "G1": nrm(ks[2], (M, K1)),
        "G2": nrm(ks[3], (M, K3)),
        "O1": nrm(ks[4], (L, K2)),
        "O2": nrm(ks[5], (L, K3)),
        "OC": nrm(ks[6], (L * N, K1 + K3)),
        "OG": nrm(ks[7], (L * M, K1 + K2)),
        "beta_global": nrm(ks[8], (1, M)),   # unused in forward
        "beta_local": nrm(ks[9], (L, M)),    # unused in forward
    }


def reference_forward(p, L, N, M):
    # Direct (un-folded) transcription of the PyTorch forward().
    C1, C2, G1, G2, O1, O2, OC, OG = (
        p["C1"], p["C2"], p["G1"], p["G2"], p["O1"], p["O2"], p["OC"], p["OG"])
    t1 = (C1 @ G1.T)[None, :, :]                                  # (1, N, M)
    t2 = (O1 @ C2.T)[:, :, None]                                  # (L, N, 1)
    t3 = (O2 @ G2.T)[:, None, :]                                  # (L, 1, M)
    catC = jnp.concatenate([C1, C2], axis=1)
    catG = jnp.concatenate([G1, G2], axis=1)
    t4 = (catC @ OG.T).T.reshape(L, M, N).transpose(0, 2, 1)      # (L, N, M)
    t5 = (catG @ OC.T).T.reshape(L, N, M)                         # (L, N, M)
    return t1 + t2 + t3 + t4 + t5


if __name__ == "__main__":
    # Small shapes consistent with the module's __init__.
    K1, K2, K3 = 8, 8, 8
    L, N, M = 2, 16, 32

    params = make_params(jax.random.PRNGKey(0), K1, K2, K3, L, N, M)

    out = matrix_model_forward(params, L, N, M)
    out = jax.block_until_ready(out)

    ref = reference_forward(params, L, N, M)
    assert out.shape == (L, N, M)
    assert jnp.allclose(out, ref, atol=1e-5, rtol=1e-5), "mismatch vs reference"

    # TODO(synk): the poisson/gaussian/negative-binomial loss methods are not part
    # of forward(); they are fancy-indexed scalar reductions and are left
    # un-kernelized here.
    print("KERNEL_OK")
</pallas_src>

<mosaic_0001>
module attributes {stable_mosaic.version = 11 : i64} {
  func.func @forward_kernel(%arg0: i32, %arg1: memref<16x16xf32, #tpu.memory_space<vmem>>, %arg2: memref<32x16xf32, #tpu.memory_space<vmem>>, %arg3: memref<16x32xf32, #tpu.memory_space<vmem>>, %arg4: memref<1x32x16xf32, #tpu.memory_space<vmem>>, %arg5: memref<1x16x16xf32, #tpu.memory_space<vmem>>, %arg6: memref<1x16x1xf32, #tpu.memory_space<vmem>>, %arg7: memref<1x1x32xf32, #tpu.memory_space<vmem>>, %arg8: memref<1x16x32xf32, #tpu.memory_space<vmem>>) attributes {dimension_semantics = [#tpu.dimension_semantics<parallel>], iteration_bounds = array<i64: 2>, scalar_prefetch = 0 : i64, scratch_operands = 0 : i64, tpu.core_type = #tpu.core_type<tc>, window_params = [{pipeline_mode = #tpu.pipeline_mode<synchronous>, transform_indices = @transform_0, window_bounds = array<i64: 16, 16>}, {pipeline_mode = #tpu.pipeline_mode<synchronous>, transform_indices = @transform_1, window_bounds = array<i64: 32, 16>}, {pipeline_mode = #tpu.pipeline_mode<synchronous>, transform_indices = @transform_2, window_bounds = array<i64: 16, 32>}, {transform_indices = @transform_3, window_bounds = array<i64: 1, 32, 16>}, {transform_indices = @transform_4, window_bounds = array<i64: 1, 16, 16>}, {transform_indices = @transform_5, window_bounds = array<i64: 1, 16, 1>}, {transform_indices = @transform_6, window_bounds = array<i64: 1, 1, 32>}, {transform_indices = @transform_7, window_bounds = array<i64: 1, 16, 32>}]} {
    %c0 = arith.constant 0 : index
    %c0_0 = arith.constant 0 : index
    %0 = vector.load %arg1[%c0, %c0_0] : memref<16x16xf32, #tpu.memory_space<vmem>>, vector<16x16xf32>
    %c0_1 = arith.constant 0 : index
    %c0_2 = arith.constant 0 : index
    %1 = vector.load %arg2[%c0_1, %c0_2] : memref<32x16xf32, #tpu.memory_space<vmem>>, vector<32x16xf32>
    %c0_3 = arith.constant 0 : index
    %c0_4 = arith.constant 0 : index
    %2 = vector.load %arg3[%c0_3, %c0_4] : memref<16x32xf32, #tpu.memory_space<vmem>>, vector<16x32xf32>
    %c0_5 = arith.constant 0 : index
    %c0_6 = arith.constant 0 : index
    %c0_7 = arith.constant 0 : index
    %3 = vector.load %arg4[%c0_5, %c0_6, %c0_7] : memref<1x32x16xf32, #tpu.memory_space<vmem>>, vector<1x32x16xf32>
    %4 = vector.shape_cast %3 : vector<1x32x16xf32> to vector<32x16xf32>
    %cst = arith.constant dense<0.000000e+00> : vector<16x32xf32>
    %5 = tpu.matmul %0, %4, %cst {dimension_numbers = #tpu.dot_dimension_numbers<[1], [1], [0], [0], [0, 0, 1, 0], [], []>} : vector<16x16xf32>, vector<32x16xf32>, vector<16x32xf32> -> vector<16x32xf32>
    %c0_8 = arith.constant 0 : index
    %c0_9 = arith.constant 0 : index
    %c0_10 = arith.constant 0 : index
    %6 = vector.load %arg5[%c0_8, %c0_9, %c0_10] : memref<1x16x16xf32, #tpu.memory_space<vmem>>, vector<1x16x16xf32>
    %7 = vector.shape_cast %6 : vector<1x16x16xf32> to vector<16x16xf32>
    %cst_11 = arith.constant dense<0.000000e+00> : vector<16x32xf32>
    %8 = tpu.matmul %7, %1, %cst_11 {dimension_numbers = #tpu.dot_dimension_numbers<[1], [1], [0], [0], [0, 0, 1, 0], [], []>} : vector<16x16xf32>, vector<32x16xf32>, vector<16x32xf32> -> vector<16x32xf32>
    %9 = arith.addf %5, %8 : vector<16x32xf32>
    %10 = arith.addf %9, %2 : vector<16x32xf32>
    %c0_12 = arith.constant 0 : index
    %c0_13 = arith.constant 0 : index
    %c0_14 = arith.constant 0 : index
    %11 = vector.load %arg6[%c0_12, %c0_13, %c0_14] : memref<1x16x1xf32, #tpu.memory_space<vmem>>, vector<1x16x1xf32>
    %12 = vector.shape_cast %11 : vector<1x16x1xf32> to vector<16x1xf32>
    %13 = vector.broadcast %12 : vector<16x1xf32> to vector<16x32xf32>
    %14 = arith.addf %10, %13 : vector<16x32xf32>
    %c0_15 = arith.constant 0 : index
    %c0_16 = arith.constant 0 : index
    %c0_17 = arith.constant 0 : index
    %15 = vector.load %arg7[%c0_15, %c0_16, %c0_17] : memref<1x1x32xf32, #tpu.memory_space<vmem>>, vector<1x1x32xf32>
    %16 = vector.shape_cast %15 : vector<1x1x32xf32> to vector<1x32xf32>
    %17 = vector.broadcast %16 : vector<1x32xf32> to vector<16x32xf32>
    %18 = arith.addf %14, %17 : vector<16x32xf32>
    %c0_18 = arith.constant 0 : index
    %c0_19 = arith.constant 0 : index
    %c0_20 = arith.constant 0 : index
    %19 = vector.load %arg8[%c0_18, %c0_19, %c0_20] : memref<1x16x32xf32, #tpu.memory_space<vmem>>, vector<1x16x32xf32>
    %20 = vector.shape_cast %19 : vector<1x16x32xf32> to vector<16x32xf32>
    %21 = vector.shape_cast %18 : vector<16x32xf32> to vector<1x16x32xf32>
    tpu.vector_store %arg8[%c0_18, %c0_19, %c0_20], %21 {strides = array<i32>} : memref<1x16x32xf32, #tpu.memory_space<vmem>>, vector<1x16x32xf32>,
    return
  }
  func.func @transform_0(%arg0: i32) -> (i32, i32) {
    %c0_i32 = arith.constant 0 : i32
    %c0_i32_0 = arith.constant 0 : i32
    %c0_i32_1 = arith.constant 0 : i32
    return %c0_i32, %c0_i32_0 : i32, i32
  }
  func.func @transform_1(%arg0: i32) -> (i32, i32) {
    %c0_i32 = arith.constant 0 : i32
    %c0_i32_0 = arith.constant 0 : i32
    %c0_i32_1 = arith.constant 0 : i32
    return %c0_i32, %c0_i32_0 : i32, i32
  }
  func.func @transform_2(%arg0: i32) -> (i32, i32) {
    %c0_i32 = arith.constant 0 : i32
    %c0_i32_0 = arith.constant 0 : i32
    %c0_i32_1 = arith.constant 0 : i32
    return %c0_i32, %c0_i32_0 : i32, i32
  }
  func.func @transform_3(%arg0: i32) -> (i32, i32, i32) {
    %c0_i32 = arith.constant 0 : i32
    %c0_i32_0 = arith.constant 0 : i32
    %c0_i32_1 = arith.constant 0 : i32
    return %arg0, %c0_i32, %c0_i32_0 : i32, i32, i32
  }
  func.func @transform_4(%arg0: i32) -> (i32, i32, i32) {
    %c0_i32 = arith.constant 0 : i32
    %c0_i32_0 = arith.constant 0 : i32
    %c0_i32_1 = arith.constant 0 : i32
    return %arg0, %c0_i32, %c0_i32_0 : i32, i32, i32
  }
  func.func @transform_5(%arg0: i32) -> (i32, i32, i32) {
    %c0_i32 = arith.constant 0 : i32
    %c0_i32_0 = arith.constant 0 : i32
    %c0_i32_1 = arith.constant 0 : i32
    return %arg0, %c0_i32, %c0_i32_0 : i32, i32, i32
  }
  func.func @transform_6(%arg0: i32) -> (i32, i32, i32) {
    %c0_i32 = arith.constant 0 : i32
    %c0_i32_0 = arith.constant 0 : i32
    %c0_i32_1 = arith.constant 0 : i32
    return %arg0, %c0_i32, %c0_i32_0 : i32, i32, i32
  }
  func.func @transform_7(%arg0: i32) -> (i32, i32, i32) {
    %c0_i32 = arith.constant 0 : i32
    %c0_i32_0 = arith.constant 0 : i32
    %c0_i32_1 = arith.constant 0 : i32
    return %arg0, %c0_i32, %c0_i32_0 : i32, i32, i32
  }
}

</mosaic_0001>

<llo_original>
// kernel: tpu_custom_call.1
$region0: #{tpu_custom_call.1}
  #allocation0 [shape = 'u32[]', space=smem, size = 0x4, offset = 0x4, fixed_abs, tag = 'smem constant byte address 0x4 - core index']
  #allocation1 [shape = 'u32[72,128]{1,0:T(1,128)}', space=vmem, size = 0x9000, scoped, tag = 'internal scratch']
  %s0 = inlined_call_operand.vmem [shape: f32[16,16], index: 0, kind: input, shape index: {}]
  %s1 = inlined_call_operand.vmem [shape: f32[32,16], index: 1, kind: input, shape index: {}]
  %s2 = inlined_call_operand.vmem [shape: f32[16,32], index: 2, kind: input, shape index: {}]
  %s3 = inlined_call_operand.vmem [shape: f32[2,32,16], index: 3, kind: input, shape index: {}]
  %s4 = inlined_call_operand.vmem [shape: f32[2,16,16], index: 4, kind: input, shape index: {}]
  %s5 = inlined_call_operand.vmem [shape: f32[2,16,1], index: 5, kind: input, shape index: {}]
  %s6 = inlined_call_operand.vmem [shape: f32[2,1,32], index: 6, kind: input, shape index: {}]
  %s7 = inlined_call_operand.hbm [shape: f32[2,16,32], index: 7, kind: output, shape index: {}]
  %s8 = sld [smem:[#allocation0]]
  $region61: #{tpu_custom_call.1} parent=0
    _
  %s10 = ssub.s32 1, %s8
  %s11 = scalar_select 0, %s10, %s8
  $region1: #{tpu_custom_call.1} parent=0
    #allocation2 [shape = 'u8[16384]{0}', space=vmem, size = 0x4000, scoped, tag = 'output window, operand 0']
    #allocation3 [shape = 's32[2]{0}', space=sflag, size = 0x8, scoped, tag = 'scoped memory for tpu_custom_call.1']
    %12 = vsyncpa [#allocation3], 0
    %s13 = scalar_lea.sflag [#allocation3], 1
    %14 = vsyncpa %s13, 0
    loop: start=0, step=1, limit=4
    $region2: #{tpu_custom_call.1} parent=1 // loop_pre_header
      _
    $region3: #{tpu_custom_call.1} parent=1 // loop_header
      %s16 = sphi 0, %s20
      %p17 = scmp.ge.s32.totalorder %s16, 4
      %s24 = sphi 0, %s24
      %s26 = sphi 0, %s24
      %s27 = sphi 0, %s26
      %s41 = sphi 0, %s27
      %s45 = sphi 0, %s45
      %s47 = sphi 0, %s45
      %s48 = sphi 0, %s47
      %s62 = sphi 0, %s48
      %s66 = sphi 0, %s66
      %s68 = sphi 0, %s66
      %s69 = sphi 0, %s68
      %s83 = sphi 0, %s69
      %s89 = sphi 0, %s91
      %s92 = sphi 0, %s89
      %s93 = sphi 0, %s92
      %s109 = sphi 0, %s93
      %s115 = sphi 0, %s117
      %s118 = sphi 0, %s115
      %s119 = sphi 0, %s118
      %s135 = sphi 0, %s119
      %s141 = sphi 0, %s143
      %s144 = sphi 0, %s141
      %s145 = sphi 0, %s144
      %s161 = sphi 0, %s145
      %s167 = sphi 0, %s169
      %s170 = sphi 0, %s167
      %s171 = sphi 0, %s170
      %s187 = sphi 0, %s171
      %s193 = sphi 0, %s195
      %s196 = sphi 0, %s193
      %s197 = sphi 0, %s196
      %s213 = sphi 0, %s197
    $region4: #{tpu_custom_call.1} parent=1 // loop_header_branch
      %19 = sbr.rel (%p17) target = $region8
    $region5: #{tpu_custom_call.1} parent=1 // loop_body
      %s21 = ssub.s32 %s16, 1
      %s22 = ssub.s32 %s16, 2
      %s23 = sadd.s32 %s16, 1
      %s25 = sadd.s32 %s24, 1
      %p28 = scmp.eq.s32.totalorder %s16, 1
      %p29 = scmp.ne.s32.totalorder %s24, %s26
      %p30 = scmp.eq.s32.totalorder %s16, 0
      %p31 = por %p29, %p30
      %p32 = scmp.ne.s32.totalorder %s24, %s26
      %p33 = scmp.eq.s32.totalorder %s21, 1
      %p34 = por %p32, %p33
      %p35 = scmp.ne.s32.totalorder %s26, %s27
      %p36 = scmp.eq.s32.totalorder %s21, 0
      %p37 = por %p35, %p36
      %p38 = scmp.ne.s32.totalorder %s26, %s27
      %p39 = scmp.eq.s32.totalorder %s22, 1
      %p40 = por %p38, %p39
      %p42 = scmp.ne.s32.totalorder %s27, %s41
      %p43 = scmp.eq.s32.totalorder %s22, 0
      %p44 = por %p42, %p43
      %s46 = sadd.s32 %s45, 1
      %p49 = scmp.eq.s32.totalorder %s16, 1
      %p50 = scmp.ne.s32.totalorder %s45, %s47
      %p51 = scmp.eq.s32.totalorder %s16, 0
      %p52 = por %p50, %p51
      %p53 = scmp.ne.s32.totalorder %s45, %s47
      %p54 = scmp.eq.s32.totalorder %s21, 1
      %p55 = por %p53, %p54
      %p56 = scmp.ne.s32.totalorder %s47, %s48
      %p57 = scmp.eq.s32.totalorder %s21, 0
      %p58 = por %p56, %p57
      %p59 = scmp.ne.s32.totalorder %s47, %s48
      %p60 = scmp.eq.s32.totalorder %s22, 1
      %p61 = por %p59, %p60
      %p63 = scmp.ne.s32.totalorder %s48, %s62
      %p64 = scmp.eq.s32.totalorder %s22, 0
      %p65 = por %p63, %p64
      %s67 = sadd.s32 %s66, 1
      %p70 = scmp.eq.s32.totalorder %s16, 1
      %p71 = scmp.ne.s32.totalorder %s66, %s68
      %p72 = scmp.eq.s32.totalorder %s16, 0
      %p73 = por %p71, %p72
      %p74 = scmp.ne.s32.totalorder %s66, %s68
      %p75 = scmp.eq.s32.totalorder %s21, 1
      %p76 = por %p74, %p75
      %p77 = scmp.ne.s32.totalorder %s68, %s69
      %p78 = scmp.eq.s32.totalorder %s21, 0
      %p79 = por %p77, %p78
      %p80 = scmp.ne.s32.totalorder %s68, %s69
      %p81 = scmp.eq.s32.totalorder %s22, 1
      %p82 = por %p80, %p81
      %p84 = scmp.ne.s32.totalorder %s69, %s83
      %p85 = scmp.eq.s32.totalorder %s22, 0
      %p86 = por %p84, %p85
      %s87 = ssub.s32 %s16, %s23
      %p88 = scmp.eq.s32.totalorder %s87, 0
      %s90 = sadd.s32 %s89, 1
      %s91 = scalar_select %p88, %s89, %s90
      %p94 = pneg %p88
      %p95 = scmp.eq.s32.totalorder %s16, 1
      %p96 = por %p94, %p95
      %p97 = scmp.ne.s32.totalorder %s89, %s92
      %p98 = scmp.eq.s32.totalorder %s16, 0
      %p99 = por %p97, %p98
      %p100 = scmp.ne.s32.totalorder %s89, %s92
      %p101 = scmp.eq.s32.totalorder %s21, 1
      %p102 = por %p100, %p101
      %p103 = scmp.ne.s32.totalorder %s92, %s93
      %p104 = scmp.eq.s32.totalorder %s21, 0
      %p105 = por %p103, %p104
      %p106 = scmp.ne.s32.totalorder %s92, %s93
      %p107 = scmp.eq.s32.totalorder %s22, 1
      %p108 = por %p106, %p107
      %p110 = scmp.ne.s32.totalorder %s93, %s109
      %p111 = scmp.eq.s32.totalorder %s22, 0
      %p112 = por %p110, %p111
      %s113 = ssub.s32 %s16, %s23
      %p114 = scmp.eq.s32.totalorder %s113, 0
      %s116 = sadd.s32 %s115, 1
      %s117 = scalar_select %p114, %s115, %s116
      %p120 = pneg %p114
      %p121 = scmp.eq.s32.totalorder %s16, 1
      %p122 = por %p120, %p121
      %p123 = scmp.ne.s32.totalorder %s115, %s118
      %p124 = scmp.eq.s32.totalorder %s16, 0
      %p125 = por %p123, %p124
      %p126 = scmp.ne.s32.totalorder %s115, %s118
      %p127 = scmp.eq.s32.totalorder %s21, 1
      %p128 = por %p126, %p127
      %p129 = scmp.ne.s32.totalorder %s118, %s119
      %p130 = scmp.eq.s32.totalorder %s21, 0
      %p131 = por %p129, %p130
      %p132 = scmp.ne.s32.totalorder %s118, %s119
      %p133 = scmp.eq.s32.totalorder %s22, 1
      %p134 = por %p132, %p133
      %p136 = scmp.ne.s32.totalorder %s119, %s135
      %p137 = scmp.eq.s32.totalorder %s22, 0
      %p138 = por %p136, %p137
      %s139 = ssub.s32 %s16, %s23
      %p140 = scmp.eq.s32.totalorder %s139, 0
      %s142 = sadd.s32 %s141, 1
      %s143 = scalar_select %p140, %s141, %s142
      %p146 = pneg %p140
      %p147 = scmp.eq.s32.totalorder %s16, 1
      %p148 = por %p146, %p147
      %p149 = scmp.ne.s32.totalorder %s141, %s144
      %p150 = scmp.eq.s32.totalorder %s16, 0
      %p151 = por %p149, %p150
      %p152 = scmp.ne.s32.totalorder %s141, %s144
      %p153 = scmp.eq.s32.totalorder %s21, 1
      %p154 = por %p152, %p153
      %p155 = scmp.ne.s32.totalorder %s144, %s145
      %p156 = scmp.eq.s32.totalorder %s21, 0
      %p157 = por %p155, %p156
      %p158 = scmp.ne.s32.totalorder %s144, %s145
      %p159 = scmp.eq.s32.totalorder %s22, 1
      %p160 = por %p158, %p159
      %p162 = scmp.ne.s32.totalorder %s145, %s161
      %p163 = scmp.eq.s32.totalorder %s22, 0
      %p164 = por %p162, %p163
      %s165 = ssub.s32 %s16, %s23
      %p166 = scmp.eq.s32.totalorder %s165, 0
      %s168 = sadd.s32 %s167, 1
      %s169 = scalar_select %p166, %s167, %s168
      %p172 = pneg %p166
      %p173 = scmp.eq.s32.totalorder %s16, 1
      %p174 = por %p172, %p173
      %p175 = scmp.ne.s32.totalorder %s167, %s170
      %p176 = scmp.eq.s32.totalorder %s16, 0
      %p177 = por %p175, %p176
      %p178 = scmp.ne.s32.totalorder %s167, %s170
      %p179 = scmp.eq.s32.totalorder %s21, 1
      %p180 = por %p178, %p179
      %p181 = scmp.ne.s32.totalorder %s170, %s171
      %p182 = scmp.eq.s32.totalorder %s21, 0
      %p183 = por %p181, %p182
      %p184 = scmp.ne.s32.totalorder %s170, %s171
      %p185 = scmp.eq.s32.totalorder %s22, 1
      %p186 = por %p184, %p185
      %p188 = scmp.ne.s32.totalorder %s171, %s187
      %p189 = scmp.eq.s32.totalorder %s22, 0
      %p190 = por %p188, %p189
      %s191 = ssub.s32 %s16, %s23
      %p192 = scmp.eq.s32.totalorder %s191, 0
      %s194 = sadd.s32 %s193, 1
      %s195 = scalar_select %p192, %s193, %s194
      %p198 = pneg %p192
      %p199 = scmp.eq.s32.totalorder %s16, 1
      %p200 = por %p198, %p199
      %p201 = scmp.ne.s32.totalorder %s193, %s196
      %p202 = scmp.eq.s32.totalorder %s16, 0
      %p203 = por %p201, %p202
      %p204 = scmp.ne.s32.totalorder %s193, %s196
      %p205 = scmp.eq.s32.totalorder %s21, 1
      %p206 = por %p204, %p205
      %p207 = scmp.ne.s32.totalorder %s196, %s197
      %p208 = scmp.eq.s32.totalorder %s21, 0
      %p209 = por %p207, %p208
      %p210 = scmp.ne.s32.totalorder %s196, %s197
      %p211 = scmp.eq.s32.totalorder %s22, 1
      %p212 = por %p210, %p211
      %p214 = scmp.ne.s32.totalorder %s197, %s213
      %p215 = scmp.eq.s32.totalorder %s22, 0
      %p216 = por %p214, %p215
      %p217 = scmp.le.s32.totalorder 1, %s16
      %p218 = scmp.lt.s32.totalorder %s16, 3
      %p219 = pnand %p217, %p218
      %p220 = pneg %p219
      // Predicated region
      $region9: #{tpu_custom_call.1} parent=5 // pred_check
        _
      $region10: #{tpu_custom_call.1} parent=5 // pred_check_branch
        %222 = sbr.rel (%p219) target = $region12
      $region11: #{tpu_custom_call.1} parent=5 // pred_region
        %s223 = ssub.s32 %s16, 1
        // Predicated region
        $region13: #{tpu_custom_call.1} parent=11 // pred_check
          %p224 = pneg %p37
        $region14: #{tpu_custom_call.1} parent=11 // pred_check_branch
          %226 = sbr.rel (%p224) target = $region16
        $region15: #{tpu_custom_call.1} parent=11 // pred_region
          _
        $region16: #{tpu_custom_call.1} parent=11 // pred_fallthru
          _
        // Predicated region
        $region17: #{tpu_custom_call.1} parent=11 // pred_check
          %p227 = pneg %p58
        $region18: #{tpu_custom_call.1} parent=11 // pred_check_branch
          %229 = sbr.rel (%p227) target = $region20
        $region19: #{tpu_custom_call.1} parent=11 // pred_region
          _
        $region20: #{tpu_custom_call.1} parent=11 // pred_fallthru
          _
        // Predicated region
        $region21: #{tpu_custom_call.1} parent=11 // pred_check
          %p230 = pneg %p79
        $region22: #{tpu_custom_call.1} parent=11 // pred_check_branch
          %232 = sbr.rel (%p230) target = $region24
        $region23: #{tpu_custom_call.1} parent=11 // pred_region
          _
        $region24: #{tpu_custom_call.1} parent=11 // pred_fallthru
          _
      $region12: #{tpu_custom_call.1} parent=5 // pred_fallthru
        _
      %p233 = scmp.lt.s32.totalorder %s16, 2
      // Predicated region
      $region25: #{tpu_custom_call.1} parent=5 // pred_check
        %p234 = pneg %p233
      $region26: #{tpu_custom_call.1} parent=5 // pred_check_branch
        %236 = sbr.rel (%p234) target = $region28
      $region27: #{tpu_custom_call.1} parent=5 // pred_region
        // Predicated region
        $region29: #{tpu_custom_call.1} parent=27 // pred_check
          %p237 = pneg %p99
        $region30: #{tpu_custom_call.1} parent=27 // pred_check_branch
          %239 = sbr.rel (%p237) target = $region32
        $region31: #{tpu_custom_call.1} parent=27 // pred_region
          %p240 = scmp.lt.s32.totalorder %s16, 1
          %s241 = scalar_select %p240, %s16, 1
          %s242 = smul.addr %s241, 4
          %s243 = smul.addr %s242, 8
          %s244 = scalar_lea.vmem %s3, %s243
        $region32: #{tpu_custom_call.1} parent=27 // pred_fallthru
          _
        // Predicated region
        $region33: #{tpu_custom_call.1} parent=27 // pred_check
          %p245 = pneg %p125
        $region34: #{tpu_custom_call.1} parent=27 // pred_check_branch
          %247 = sbr.rel (%p245) target = $region36
        $region35: #{tpu_custom_call.1} parent=27 // pred_region
          %p248 = scmp.lt.s32.totalorder %s16, 1
          %s249 = scalar_select %p248, %s16, 1
          %s250 = smul.addr %s249, 2
          %s251 = smul.addr %s250, 8
          %s252 = scalar_lea.vmem %s4, %s251
        $region36: #{tpu_custom_call.1} parent=27 // pred_fallthru
          _
        // Predicated region
        $region37: #{tpu_custom_call.1} parent=27 // pred_check
          %p253 = pneg %p151
        $region38: #{tpu_custom_call.1} parent=27 // pred_check_branch
          %255 = sbr.rel (%p253) target = $region40
        $region39: #{tpu_custom_call.1} parent=27 // pred_region
          %p256 = scmp.lt.s32.totalorder %s16, 1
          %s257 = scalar_select %p256, %s16, 1
          %s258 = smul.addr %s257, 2
          %s259 = smul.addr %s258, 8
          %s260 = scalar_lea.vmem %s5, %s259
        $region40: #{tpu_custom_call.1} parent=27 // pred_fallthru
          _
        // Predicated region
        $region41: #{tpu_custom_call.1} parent=27 // pred_check
          %p261 = pneg %p177
        $region42: #{tpu_custom_call.1} parent=27 // pred_check_branch
          %263 = sbr.rel (%p261) target = $region44
        $region43: #{tpu_custom_call.1} parent=27 // pred_region
          %p264 = scmp.lt.s32.totalorder %s16, 1
          %s265 = scalar_select %p264, %s16, 1
          %s266 = scalar_lea.vmem %s6, %s265
        $region44: #{tpu_custom_call.1} parent=27 // pred_fallthru
          _
      $region28: #{tpu_custom_call.1} parent=5 // pred_fallthru
        _
      %p267 = scmp.le.s32.totalorder 1, %s16
      %p268 = scmp.lt.s32.totalorder %s16, 3
      %p269 = pnand %p267, %p268
      %p270 = pneg %p269
      // Predicated region
      $region45: #{tpu_custom_call.1} parent=5 // pred_check
        _
      $region46: #{tpu_custom_call.1} parent=5 // pred_check_branch
        %272 = sbr.rel (%p269) target = $region48
      $region47: #{tpu_custom_call.1} parent=5 // pred_region
        %s273 = ssub.s32 %s16, 1
        %p274 = pneg %p37
        %p275 = pneg %p34
        %p276 = pneg %p58
        %p277 = pneg %p55
        %p278 = pneg %p79
        %p279 = pneg %p76
        %p280 = scmp.lt.s32.totalorder %s21, 1
        %s281 = scalar_select %p280, %s21, 1
        %s282 = smul.addr %s281, 4
        %s283 = smul.addr %s282, 8
        %s284 = scalar_lea.vmem %s3, %s283
        %p285 = pneg %p105
        %p286 = pneg %p102
        %p287 = scmp.lt.s32.totalorder %s21, 1
        %s288 = scalar_select %p287, %s21, 1
        %s289 = smul.addr %s288, 2
        %s290 = smul.addr %s289, 8
        %s291 = scalar_lea.vmem %s4, %s290
        %p292 = pneg %p131
        %p293 = pneg %p128
        %p294 = scmp.lt.s32.totalorder %s21, 1
        %s295 = scalar_select %p294, %s21, 1
        %s296 = smul.addr %s295, 2
        %s297 = smul.addr %s296, 8
        %s298 = scalar_lea.vmem %s5, %s297
        %p299 = pneg %p157
        %p300 = pneg %p154
        %p301 = scmp.lt.s32.totalorder %s21, 1
        %s302 = scalar_select %p301, %s21, 1
        %s303 = scalar_lea.vmem %s6, %s302
        %p304 = pneg %p183
        %p305 = pneg %p180
        %p306 = pneg %p209
        %p307 = pneg %p206
        %s308 = sand.u32 %s196, 1
        %s309 = scalar_lea.sflag [#allocation3], %s308
        %s310 = sand.u32 %s196, 1
        %s311 = smul.addr %s310, 16
        %s312 = scalar_lea.vmem [#allocation2], %s311
        %p313 = scmp.lt.s32.totalorder %s21, 1
        %s314 = scalar_select %p313, %s21, 1
        %s315 = smul.addr %s314, 4
        %s316 = smul.addr %s315, 8
        %s317 = scalar_lea.vmem %s3, %s316
        %p318 = scmp.lt.s32.totalorder %s21, 1
        %s319 = scalar_select %p318, %s21, 1
        %s320 = smul.addr %s319, 2
        %s321 = smul.addr %s320, 8
        %s322 = scalar_lea.vmem %s4, %s321
        %p323 = scmp.lt.s32.totalorder %s21, 1
        %s324 = scalar_select %p323, %s21, 1
        %s325 = smul.addr %s324, 2
        %s326 = smul.addr %s325, 8
        %s327 = scalar_lea.vmem %s5, %s326
        %p328 = scmp.lt.s32.totalorder %s21, 1
        %s329 = scalar_select %p328, %s21, 1
        %s330 = scalar_lea.vmem %s6, %s329
        %v331 = vld [vmem:[%s0] sm:$0xff]
        %v332 = vld [vmem:[%s0 + $0x8] sm:$0xff]
        %v333 = vld [vmem:[%s1] sm:$0xff]
        %v334 = vld [vmem:[%s1 + $0x8] sm:$0xff]
        %v335 = vld [vmem:[%s1 + $0x10] sm:$0xff]
        %v336 = vld [vmem:[%s1 + $0x18] sm:$0xff]
        %v337 = vld [vmem:[%s2] sm:$0xff]
        %v338 = vld [vmem:[%s2 + $0x8] sm:$0xff]
        %v339 = vld [vmem:[%s317] sm:$0xff]
        %v340 = vld [vmem:[%s317 + $0x8] sm:$0xff]
        %v341 = vld [vmem:[%s317 + $0x10] sm:$0xff]
        %v342 = vld [vmem:[%s317 + $0x18] sm:$0xff]
        %v343 = vld [vmem:[%s322] sm:$0xff]
        %v344 = vld [vmem:[%s322 + $0x8] sm:$0xff]
        %vm345 = vcmask 130048
        %v347 = vsel %vm345, %v343, 0
        %v350 = vsel %vm345, %v344, 0
        %v353 = vsel %vm345, %v333, 0
        %v356 = vsel %vm345, %v334, 0
        %v359 = vsel %vm345, %v335, 0
        %v362 = vsel %vm345, %v336, 0
        %364 = vmatpush.xpose.msra.mxu0 0.0
        %365 = vmatpush.xpose.msra.mxu0 0.0
        %366 = vmatpush.xpose.msra.mxu0 0.0
        %367 = vmatpush.xpose.msra.mxu0 0.0
        %368 = vmatpush.xpose.msra.mxu0 0.0
        %369 = vmatpush.xpose.msra.mxu0 0.0
        %370 = vmatpush.xpose.msra.mxu0 0.0
        %371 = vmatpush.xpose.msra.mxu0 0.0
        %372 = vmatpush.xpose.msra.mxu0 0.0
        %373 = vmatpush.xpose.msra.mxu0 0.0
        %374 = vmatpush.xpose.msra.mxu0 0.0
        %375 = vmatpush.xpose.msra.mxu0 0.0
        %376 = vmatpush.xpose.msra.mxu0 %v362
        %377 = vmatpush.xpose.msra.mxu0 %v359
        %378 = vmatpush.xpose.msra.mxu0 %v356
        %379 = vmatpush.xpose.msra.mxu0 %v353
        %380 = vmatmul.f32.gmra.mxu0 %v347
        %v381 = vpop.f32.mrf.mxu0
        %v382 = vadd.f32 0.0, %v381
        %383 = vmatmul.f32.gmra.mxu0 %v350
        %v384 = vpop.f32.mrf.mxu0
        %v385 = vadd.f32 0.0, %v384
        %386 = vdwg.mxu0
        %v388 = vsel %vm345, %v331, 0
        %v391 = vsel %vm345, %v332, 0
        %v394 = vsel %vm345, %v339, 0
        %v397 = vsel %vm345, %v340, 0
        %v400 = vsel %vm345, %v341, 0
        %v403 = vsel %vm345, %v342, 0
        %405 = vmatpush.xpose.msra.mxu0 0.0
        %406 = vmatpush.xpose.msra.mxu0 0.0
        %407 = vmatpush.xpose.msra.mxu0 0.0
        %408 = vmatpush.xpose.msra.mxu0 0.0
        %409 = vmatpush.xpose.msra.mxu0 0.0
        %410 = vmatpush.xpose.msra.mxu0 0.0
        %411 = vmatpush.xpose.msra.mxu0 0.0
        %412 = vmatpush.xpose.msra.mxu0 0.0
        %413 = vmatpush.xpose.msra.mxu0 0.0
        %414 = vmatpush.xpose.msra.mxu0 0.0
        %415 = vmatpush.xpose.msra.mxu0 0.0
        %416 = vmatpush.xpose.msra.mxu0 0.0
        %417 = vmatpush.xpose.msra.mxu0 %v403
        %418 = vmatpush.xpose.msra.mxu0 %v400
        %419 = vmatpush.xpose.msra.mxu0 %v397
        %420 = vmatpush.xpose.msra.mxu0 %v394
        %421 = vmatmul.f32.gmra.mxu0 %v388
        %v422 = vpop.f32.mrf.mxu0
        %v423 = vadd.f32 %v382, %v422
        %424 = vmatmul.f32.gmra.mxu0 %v391
        %v425 = vpop.f32.mrf.mxu0
        %v426 = vadd.f32 %v385, %v425
        %427 = vdwg.mxu0
        %v428 = vadd.f32 %v423, %v337
        %v429 = vadd.f32 %v426, %v338
        %v430 = vld [vmem:[%s327] sm:$0xff]
        %v431 = vld [vmem:[%s327 + $0x8] sm:$0xff]
        %433 = vset.pattern.permute.xlu0 0
        %434 = vperm.xlu0 %433, %v430
        %v435 = vpop.permute.xlu0 %434
        %438 = vset.pattern.permute.xlu0 0
        %439 = vperm.xlu0 %438, %v431
        %v440 = vpop.permute.xlu0 %439
        %v442 = vadd.f32 %v428, %v435
        %v443 = vadd.f32 %v429, %v440
        %v444 = vld [vmem:[%s330] sm:$0x1]
        %v446 = vperm.slane %v444, 0
        %v448 = vadd.f32 %v442, %v446
        %v449 = vadd.f32 %v443, %v446
        %vm450 = vcmask 261120
        %451 = vst.msk [vmem:[%s312] sm:$0xff] %vm450, %v448
        %452 = vst.msk [vmem:[%s312 + $0x8] sm:$0xff] %vm450, %v449
        %s453 = sand.u32 %s196, 1
        %s454 = scalar_lea.sflag [#allocation3], %s453
        %s455 = sand.u32 %s196, 1
        %s456 = smul.addr %s455, 16
        %s457 = scalar_lea.vmem [#allocation2], %s456
        // Predicated region
        $region49: #{tpu_custom_call.1} parent=47 // pred_check
          %p458 = pneg %p206
        $region50: #{tpu_custom_call.1} parent=47 // pred_check_branch
          %460 = sbr.rel (%p458) target = $region52
        $region51: #{tpu_custom_call.1} parent=47 // pred_region
          %462 = vsyncadd %s454, 0
          %s463 = smul.addr %s21, 2
          %s464 = smul.addr %s463, 8
          %s465 = scalar_lea.hbm %s7, %s464
          %s466 = sshll.u32 %s457, 4
          %s467 = int_to_ptr.vmem [resolvable:$true] %s466
          %s468 = sshll.u32 %s465, 4
          %s469 = int_to_ptr.hbm [resolvable:$true] %s468
          %474 = dma.vmem_to_hbm [thread:$0]  %s467, 256, %s469, %s454, 128, 128, 8
        $region52: #{tpu_custom_call.1} parent=47 // pred_fallthru
          _
      $region48: #{tpu_custom_call.1} parent=5 // pred_fallthru
        _
      %p475 = scmp.le.s32.totalorder 2, %s16
      // Predicated region
      $region53: #{tpu_custom_call.1} parent=5 // pred_check
        %p476 = pneg %p475
      $region54: #{tpu_custom_call.1} parent=5 // pred_check_branch
        %478 = sbr.rel (%p476) target = $region56
      $region55: #{tpu_custom_call.1} parent=5 // pred_region
        %s479 = ssub.s32 %s16, 2
        // Predicated region
        $region57: #{tpu_custom_call.1} parent=55 // pred_check
          %p480 = pneg %p212
        $region58: #{tpu_custom_call.1} parent=55 // pred_check_branch
          %482 = sbr.rel (%p480) target = $region60
        $region59: #{tpu_custom_call.1} parent=55 // pred_region
          %s483 = sand.u32 %s197, 1
          %s484 = scalar_lea.sflag [#allocation3], %s483
          %s485 = sand.u32 %s197, 1
          %s486 = smul.addr %s485, 16
          %s487 = scalar_lea.vmem [#allocation2], %s486
          %489 = dma.done %s484, 256
        $region60: #{tpu_custom_call.1} parent=55 // pred_fallthru
          _
      $region56: #{tpu_custom_call.1} parent=5 // pred_fallthru
        _
    $region6: #{tpu_custom_call.1} parent=1 // loop_footer
      %s20 = sadd.s32 1, %s16
    $region7: #{tpu_custom_call.1} parent=1 // loop_footer_branch
      %15 = sbr.rel target = $region3
    $region8: #{tpu_custom_call.1} parent=1 // loop_exit
      _
    %490 = vsyncpa [#allocation3], 1
    %s491 = scalar_lea.sflag [#allocation3], 1
    %492 = vsyncpa %s491, 1

</llo_original>
